<compile_context>
chip_gen: v5e
topology: v5e:2x2
jax: 0.10.0
libtpu: 0.0.40
codegen_flags: <defaults>
</compile_context>

<pallas_src>
import jax
import jax.numpy as jnp
from jax.experimental import pallas as pl
from jax.experimental.pallas import tpu as pltpu


def _make_kernel(has_eb_tok: bool, has_evb_tok: bool):
    """Build the FFN-adapter kernel for a given set of per-token bias inputs."""

    def kernel(*refs):
        x_ref, w1_ref, b1_ref, w2_ref, b2_ref = refs[:5]
        i = 5
        eb_ref = evb_ref = None
        if has_eb_tok:
            eb_ref = refs[i]; i += 1
        if has_evb_tok:
            evb_ref = refs[i]; i += 1
        o_ref = refs[i]

        # s1 = x @ W1 (+ b1 + external_bias); f32 accumulation on the MXU.
        s1 = jnp.dot(x_ref[...], w1_ref[...], preferred_element_type=jnp.float32)
        s1 = s1 + b1_ref[...]                      # f32 bias (+ folded broadcast eb)
        if has_eb_tok:
            s1 = s1 + eb_ref[...].astype(jnp.float32)   # streamed in compute dtype
        s1 = jnp.maximum(s1, 0.0)                  # relu; dropout == identity (inference)
        # TODO(synk): activation_statistic side channel not implemented.

        # s2 = s1 @ W2 (+ b2 + external_value_bias)
        s2 = jnp.dot(s1.astype(w2_ref.dtype), w2_ref[...],
                     preferred_element_type=jnp.float32)
        s2 = s2 + b2_ref[...]
        if has_evb_tok:
            s2 = s2 + evb_ref[...].astype(jnp.float32)
        o_ref[...] = s2.astype(o_ref.dtype)

    return kernel


def _round_up(x: int, m: int) -> int:
    return ((x + m - 1) // m) * m


def _pad2d(a, rows, cols):
    r, c = a.shape
    if r == rows and c == cols:
        return a
    return jnp.pad(a, ((0, rows - r), (0, cols - c)))


def _default_vmem_limit_bytes():
    """~75% of this generation's physical VMEM (96 MiB v5e/v6e, 48 MiB v7x)."""
    cap = None
    try:
        cap = getattr(pltpu.get_tpu_info(), "vmem_capacity_bytes", None)
    except Exception:
        cap = None
    if not cap:
        cap = 64 * 1024 * 1024          # conservative fallback: v7x per-TC VMEM
    return max(32 * 1024 * 1024, int(0.75 * int(cap)))


def feedforward_adapter(x, w1, b1, w2, b2,
                        external_bias=None, external_value_bias=None,
                        *, tile_m=512, compute_dtype=None,
                        vmem_limit_bytes=None, stream_buffers=3):
    """x: [B, S, D]; w1: [D, F] (= torch W1^T); w2: [F, D] (= torch W2^T)."""
    B, S, D = x.shape
    F = w1.shape[1]
    assert w1.shape == (D, F) and w2.shape == (F, D)
    assert b1.size == F and b2.size == D
    M = B * S

    out_dtype = jnp.dtype(x.dtype)
    if compute_dtype is None:
        # bf16 operands (full MXU rate, half the weight/x DMA bytes) for f32 inputs.
        cdt = jnp.dtype(jnp.bfloat16) if out_dtype == jnp.float32 else out_dtype
    else:
        cdt = jnp.dtype(compute_dtype)
    sub = {4: 8, 2: 16, 1: 32}.get(cdt.itemsize, 8)   # sublane packing for compute dtype

    if vmem_limit_bytes is None:
        vmem_limit_bytes = _default_vmem_limit_bytes()
    # Leave >= 12 MiB below the hard limit for compiler-internal scratch.
    budget = max(vmem_limit_bytes - 12 * 1024 * 1024, vmem_limit_bytes // 2)

    # Lane-dense padded feature dims; zero padding is mathematically exact and
    # only applied when a dim is misaligned to 128.
    Dp = _round_up(D, 128)
    Fp = _round_up(F, 128)
    pad_d = Dp != D
    pad_f = Fp != F

    # ---- fold broadcastable external biases into the linear biases (f32) ----
    b1_eff = b1.astype(jnp.float32).reshape(1, F)
    b2_eff = b2.astype(jnp.float32).reshape(1, D)
    eb_tok = None
    if external_bias is not None:
        eb = jnp.asarray(external_bias)
        if eb.size == F:                                  # [F] or [1, F] -> fold (exact)
            b1_eff = b1_eff + eb.astype(jnp.float32).reshape(1, F)
        else:                                             # [B, S, F] -> stream in cdt
            eb_tok = eb.reshape(M, F).astype(cdt)
    evb_tok = None
    if external_value_bias is not None:
        evb = jnp.asarray(external_value_bias)
        if evb.size == D:                                 # [D] or [1, D] -> fold (exact)
            b2_eff = b2_eff + evb.astype(jnp.float32).reshape(1, D)
        else:                                             # [B, S, D] -> stream in cdt
            evb_tok = evb.reshape(M, D).astype(cdt)

    out_itemsize = out_dtype.itemsize

    def _vmem_bytes(tm_):
        w = 2 * Dp * Fp * cdt.itemsize                        # W1 + W2, single buffer
        bias = 4 * (Fp + Dp)                                  # f32 b1/b2, single buffer
        x_in = stream_buffers * tm_ * Dp * cdt.itemsize       # streamed x tiles
        out_b = 2 * tm_ * Dp * out_itemsize                   # output double-buffer (out dtype!)
        inter = tm_ * Fp * (4 + cdt.itemsize) + tm_ * Dp * 4  # s1 f32 + s1 cdt copy + s2 f32
        tok = 0
        if eb_tok is not None:
            tok += stream_buffers * tm_ * Fp * cdt.itemsize
        if evb_tok is not None:
            tok += stream_buffers * tm_ * Dp * cdt.itemsize
        return w + bias + x_in + out_b + inter + tok

    # Large, sublane-aligned M tile; capped at ceil(M/2) so the "parallel" grid
    # axis produces >= 2 tiles (keeps both v7x TensorCores busy), then shrunk
    # until it fits the VMEM budget.
    tm = _round_up(max(min(tile_m, M), 1), sub)
    tm = min(tm, _round_up(max((M + 1) // 2, 1), sub))
    tm = max(tm, sub)
    while tm > sub and _vmem_bytes(tm) > budget:
        tm = max(sub, _round_up(tm // 2, sub))

    num_tiles = pl.cdiv(M, tm)   # last tile is a masked partial block; no M padding

    # ---- prepare operands (weights cast/padded once; x only padded if D%128) ----
    x2d = x.reshape(M, D)
    if x2d.dtype != cdt:
        x2d = x2d.astype(cdt)
    if pad_d:
        x2d = _pad2d(x2d, M, Dp)

    w1p = _pad2d(w1.astype(cdt), Dp, Fp)
    w2p = _pad2d(w2.astype(cdt), Fp, Dp)
    b1p = _pad2d(b1_eff, 1, Fp)
    b2p = _pad2d(b2_eff, 1, Dp)

    operands = [x2d, w1p, b1p, w2p, b2p]
    if eb_tok is not None:
        operands.append(_pad2d(eb_tok, M, Fp) if pad_f else eb_tok)
    if evb_tok is not None:
        operands.append(_pad2d(evb_tok, M, Dp) if pad_d else evb_tok)

    def _call(depth):
        stream = {} if depth == 2 else dict(pipeline_mode=pl.Buffered(depth))
        resident = dict(pipeline_mode=pl.Buffered(1))       # DMA once, stay resident
        in_specs = [
            pl.BlockSpec((tm, Dp), lambda i: (i, 0), **stream),       # x tile
            pl.BlockSpec((Dp, Fp), lambda i: (0, 0), **resident),     # W1
            pl.BlockSpec((1, Fp), lambda i: (0, 0), **resident),      # b1 (+ folded eb)
            pl.BlockSpec((Fp, Dp), lambda i: (0, 0), **resident),     # W2
            pl.BlockSpec((1, Dp), lambda i: (0, 0), **resident),      # b2 (+ folded evb)
        ]
        if eb_tok is not None:
            in_specs.append(pl.BlockSpec((tm, Fp), lambda i: (i, 0), **stream))
        if evb_tok is not None:
            in_specs.append(pl.BlockSpec((tm, Dp), lambda i: (i, 0), **stream))
        return pl.pallas_call(
            _make_kernel(eb_tok is not None, evb_tok is not None),
            out_shape=jax.ShapeDtypeStruct((M, Dp), out_dtype),
            grid=(num_tiles,),
            in_specs=in_specs,
            out_specs=pl.BlockSpec((tm, Dp), lambda i: (i, 0)),
            compiler_params=pltpu.CompilerParams(
                dimension_semantics=("parallel",),
                vmem_limit_bytes=vmem_limit_bytes),
        )(*operands)

    if stream_buffers == 2:
        out2d = _call(2)
    else:
        try:   # deeper input pipelining; fall back to default double-buffering if rejected
            out2d = jax.block_until_ready(_call(stream_buffers))
        except Exception:
            out2d = _call(2)

    if pad_d:
        out2d = out2d[:, :D]
    return out2d.reshape(B, S, D)


def _reference(x, w1, b1, w2, b2, eb=None, evb=None, compute_dtype=jnp.float32):
    """Pure-JAX reference mirroring the kernel numerics (cdt operands, f32 accum)."""
    cdt = jnp.dtype(compute_dtype)
    B, S, D = x.shape
    F = w1.shape[1]
    xc = x.reshape(-1, D).astype(cdt)
    s1 = jnp.dot(xc, w1.astype(cdt), preferred_element_type=jnp.float32)
    s1 = s1 + b1.astype(jnp.float32).reshape(1, F)
    if eb is not None:
        eb = jnp.asarray(eb)
        if eb.size == F:
            s1 = s1 + eb.astype(jnp.float32).reshape(1, F)
        else:
            s1 = s1 + eb.reshape(-1, F).astype(cdt).astype(jnp.float32)
    s1 = jnp.maximum(s1, 0.0)
    s2 = jnp.dot(s1.astype(cdt), w2.astype(cdt), preferred_element_type=jnp.float32)
    s2 = s2 + b2.astype(jnp.float32).reshape(1, D)
    if evb is not None:
        evb = jnp.asarray(evb)
        if evb.size == D:
            s2 = s2 + evb.astype(jnp.float32).reshape(1, D)
        else:
            s2 = s2 + evb.reshape(-1, D).astype(cdt).astype(jnp.float32)
    return s2.astype(x.dtype).reshape(B, S, D)


if __name__ == "__main__":
    # [batch, seq, hid] with hid=128, ff=256 (lane-aligned fast path).
    B, S, D, F = 2, 8, 128, 256
    key = jax.random.PRNGKey(0)
    kx, kw1, kb1, kw2, kb2, keb, kevb, keb2, kevb2, k4 = jax.random.split(key, 10)

    x = jax.random.normal(kx, (B, S, D), jnp.float32)
    # Deterministic parameter init (stand-in for nn.Linear's init).
    w1 = jax.random.normal(kw1, (D, F), jnp.float32) * 0.05   # = torch W1^T
    b1 = jax.random.normal(kb1, (F,), jnp.float32) * 0.01
    w2 = jax.random.normal(kw2, (F, D), jnp.float32) * 0.05   # = torch W2^T
    b2 = jax.random.normal(kb2, (D,), jnp.float32) * 0.01

    # Case 1: default compute dtype (bf16 operands, f32 accum), broadcast biases.
    eb = jax.random.normal(keb, (1, F), jnp.float32) * 0.1
    evb = jax.random.normal(kevb, (1, D), jnp.float32) * 0.1
    out = jax.block_until_ready(
        feedforward_adapter(x, w1, b1, w2, b2,
                            external_bias=eb, external_value_bias=evb))
    ref = _reference(x, w1, b1, w2, b2, eb, evb, compute_dtype=jnp.bfloat16)
    assert out.shape == (B, S, D) and out.dtype == x.dtype
    assert jnp.allclose(out, ref, atol=2e-2, rtol=2e-2), "mismatch (bf16, broadcast bias)"

    # Case 2: per-token external biases ([B,S,F] / [B,S,D]) streamed in bf16.
    eb_tok = jax.random.normal(keb2, (B, S, F), jnp.float32) * 0.1
    evb_tok = jax.random.normal(kevb2, (B, S, D), jnp.float32) * 0.1
    out2 = jax.block_until_ready(
        feedforward_adapter(x, w1, b1, w2, b2,
                            external_bias=eb_tok, external_value_bias=evb_tok))
    ref2 = _reference(x, w1, b1, w2, b2, eb_tok, evb_tok, compute_dtype=jnp.bfloat16)
    assert jnp.allclose(out2, ref2, atol=2e-2, rtol=2e-2), "mismatch (bf16, per-token bias)"

    # Case 3: explicit f32 compute, no external bias -> tight tolerance.
    out3 = jax.block_until_ready(
        feedforward_adapter(x, w1, b1, w2, b2, compute_dtype=jnp.float32))
    ref3 = _reference(x, w1, b1, w2, b2, compute_dtype=jnp.float32)
    assert jnp.allclose(out3, ref3, atol=1e-3, rtol=1e-3), "mismatch (f32, no bias)"

    # Case 4: misaligned D/F and a partial last M tile (padding fallback + masking).
    B4, S4, D4, F4 = 2, 5, 96, 160
    k4a, k4b, k4c, k4d, k4e, k4f = jax.random.split(k4, 6)
    x4 = jax.random.normal(k4a, (B4, S4, D4), jnp.float32)
    w14 = jax.random.normal(k4b, (D4, F4), jnp.float32) * 0.05
    b14 = jax.random.normal(k4c, (F4,), jnp.float32) * 0.01
    w24 = jax.random.normal(k4d, (F4, D4), jnp.float32) * 0.05
    b24 = jax.random.normal(k4e, (D4,), jnp.float32) * 0.01
    eb4 = jax.random.normal(k4f, (B4, S4, F4), jnp.float32) * 0.1
    out4 = jax.block_until_ready(
        feedforward_adapter(x4, w14, b14, w24, b24, external_bias=eb4,
                            compute_dtype=jnp.float32))
    ref4 = _reference(x4, w14, b14, w24, b24, eb4, compute_dtype=jnp.float32)
    assert jnp.allclose(out4, ref4, atol=1e-3, rtol=1e-3), "mismatch (misaligned/partial)"

    print("KERNEL_OK")
</pallas_src>

<mosaic_0001>
module attributes {stable_mosaic.version = 11 : i64} {
  func.func @kernel(%arg0: i32, %arg1: memref<16x128xbf16, #tpu.memory_space<vmem>>, %arg2: memref<128x256xbf16, #tpu.memory_space<vmem>>, %arg3: memref<1x256xf32, #tpu.memory_space<vmem>>, %arg4: memref<256x128xbf16, #tpu.memory_space<vmem>>, %arg5: memref<1x128xf32, #tpu.memory_space<vmem>>, %arg6: memref<16x128xf32, #tpu.memory_space<vmem>>) attributes {dimension_semantics = [#tpu.dimension_semantics<parallel>], iteration_bounds = array<i64: 1>, scalar_prefetch = 0 : i64, scratch_operands = 0 : i64, tpu.core_type = #tpu.core_type<tc>, window_params = [{transform_indices = @transform_0, window_bounds = array<i64: 16, 128>}, {pipeline_mode = #tpu.pipeline_mode<synchronous>, transform_indices = @transform_1, window_bounds = array<i64: 128, 256>}, {pipeline_mode = #tpu.pipeline_mode<synchronous>, transform_indices = @transform_2, window_bounds = array<i64: 1, 256>}, {pipeline_mode = #tpu.pipeline_mode<synchronous>, transform_indices = @transform_3, window_bounds = array<i64: 256, 128>}, {pipeline_mode = #tpu.pipeline_mode<synchronous>, transform_indices = @transform_4, window_bounds = array<i64: 1, 128>}, {transform_indices = @transform_5, window_bounds = array<i64: 16, 128>}]} {
    %c0 = arith.constant 0 : index
    %c0_0 = arith.constant 0 : index
    %0 = vector.load %arg1[%c0, %c0_0] : memref<16x128xbf16, #tpu.memory_space<vmem>>, vector<16x128xbf16>
    %c0_1 = arith.constant 0 : index
    %c0_2 = arith.constant 0 : index
    %1 = vector.load %arg2[%c0_1, %c0_2] : memref<128x256xbf16, #tpu.memory_space<vmem>>, vector<128x256xbf16>
    %cst = arith.constant dense<0.000000e+00> : vector<16x256xf32>
    %2 = tpu.matmul %0, %1, %cst {dimension_numbers = #tpu.dot_dimension_numbers<[1], [0], [0], [1], [0, 0, 1, 1], [], []>} : vector<16x128xbf16>, vector<128x256xbf16>, vector<16x256xf32> -> vector<16x256xf32>
    %c0_3 = arith.constant 0 : index
    %c0_4 = arith.constant 0 : index
    %3 = vector.load %arg3[%c0_3, %c0_4] : memref<1x256xf32, #tpu.memory_space<vmem>>, vector<1x256xf32>
    %4 = vector.broadcast %3 : vector<1x256xf32> to vector<16x256xf32>
    %5 = arith.addf %2, %4 : vector<16x256xf32>
    %cst_5 = arith.constant 0.000000e+00 : f32
    %6 = vector.broadcast %cst_5 : f32 to vector<16x256xf32>
    %7 = arith.maximumf %5, %6 : vector<16x256xf32>
    %8 = arith.truncf %7 : vector<16x256xf32> to vector<16x256xbf16>
    %c0_6 = arith.constant 0 : index
    %c0_7 = arith.constant 0 : index
    %9 = vector.load %arg4[%c0_6, %c0_7] : memref<256x128xbf16, #tpu.memory_space<vmem>>, vector<256x128xbf16>
    %cst_8 = arith.constant dense<0.000000e+00> : vector<16x128xf32>
    %10 = tpu.matmul %8, %9, %cst_8 {dimension_numbers = #tpu.dot_dimension_numbers<[1], [0], [0], [1], [0, 0, 1, 1], [], []>} : vector<16x256xbf16>, vector<256x128xbf16>, vector<16x128xf32> -> vector<16x128xf32>
    %c0_9 = arith.constant 0 : index
    %c0_10 = arith.constant 0 : index
    %11 = vector.load %arg5[%c0_9, %c0_10] : memref<1x128xf32, #tpu.memory_space<vmem>>, vector<1x128xf32>
    %12 = vector.broadcast %11 : vector<1x128xf32> to vector<16x128xf32>
    %13 = arith.addf %10, %12 : vector<16x128xf32>
    %c0_11 = arith.constant 0 : index
    %c0_12 = arith.constant 0 : index
    %14 = vector.load %arg6[%c0_11, %c0_12] : memref<16x128xf32, #tpu.memory_space<vmem>>, vector<16x128xf32>
    tpu.vector_store %arg6[%c0_11, %c0_12], %13 {strides = array<i32>} : memref<16x128xf32, #tpu.memory_space<vmem>>, vector<16x128xf32>,
    return
  }
  func.func @transform_0(%arg0: i32) -> (i32, i32) {
    %c0_i32 = arith.constant 0 : i32
    %c0_i32_0 = arith.constant 0 : i32
    return %arg0, %c0_i32 : i32, i32
  }
  func.func @transform_1(%arg0: i32) -> (i32, i32) {
    %c0_i32 = arith.constant 0 : i32
    %c0_i32_0 = arith.constant 0 : i32
    %c0_i32_1 = arith.constant 0 : i32
    return %c0_i32, %c0_i32_0 : i32, i32
  }
  func.func @transform_2(%arg0: i32) -> (i32, i32) {
    %c0_i32 = arith.constant 0 : i32
    %c0_i32_0 = arith.constant 0 : i32
    %c0_i32_1 = arith.constant 0 : i32
    return %c0_i32, %c0_i32_0 : i32, i32
  }
  func.func @transform_3(%arg0: i32) -> (i32, i32) {
    %c0_i32 = arith.constant 0 : i32
    %c0_i32_0 = arith.constant 0 : i32
    %c0_i32_1 = arith.constant 0 : i32
    return %c0_i32, %c0_i32_0 : i32, i32
  }
  func.func @transform_4(%arg0: i32) -> (i32, i32) {
    %c0_i32 = arith.constant 0 : i32
    %c0_i32_0 = arith.constant 0 : i32
    %c0_i32_1 = arith.constant 0 : i32
    return %c0_i32, %c0_i32_0 : i32, i32
  }
  func.func @transform_5(%arg0: i32) -> (i32, i32) {
    %c0_i32 = arith.constant 0 : i32
    %c0_i32_0 = arith.constant 0 : i32
    return %arg0, %c0_i32 : i32, i32
  }
}

</mosaic_0001>

<llo_original>
// kernel: tpu_custom_call.1
$region0: #{tpu_custom_call.1}
  #allocation0 [shape = 'u32[]', space=smem, size = 0x4, offset = 0x4, fixed_abs, tag = 'smem constant byte address 0x4 - core index']
  #allocation1 [shape = 'u32[72,128]{1,0:T(1,128)}', space=vmem, size = 0x9000, scoped, tag = 'internal scratch']
  %s0 = inlined_call_operand.hbm [shape: bf16[16,128], index: 0, kind: input, shape index: {}]
  %s1 = inlined_call_operand.hbm [shape: bf16[128,256], index: 1, kind: input, shape index: {}]
  %s2 = inlined_call_operand.hbm [shape: f32[1,256], index: 2, kind: input, shape index: {}]
  %s3 = inlined_call_operand.hbm [shape: bf16[256,128], index: 3, kind: input, shape index: {}]
  %s4 = inlined_call_operand.vmem [shape: f32[1,128], index: 4, kind: input, shape index: {}]
  %s5 = inlined_call_operand.hbm [shape: f32[16,128], index: 5, kind: output, shape index: {}]
  %s6 = sld [smem:[#allocation0]]
  $region46: #{tpu_custom_call.1} parent=0
    _
  %s8 = ssub.s32 1, %s6
  %s9 = scalar_select 0, %s8, %s6
  $region1: #{tpu_custom_call.1} parent=0
    #allocation2 [shape = 'u8[4096]{0}', space=vmem, size = 0x1000, scoped, tag = 'input window, operand 0, single buffered']
    #allocation3 [shape = 's32[1]{0}', space=sflag, size = 0x4, scoped, tag = 'scoped memory for tpu_custom_call.1']
    #allocation4 [shape = 's32[1]{0}', space=sflag, size = 0x4, scoped, tag = 'scoped memory for tpu_custom_call.1']
    #allocation5 [shape = 'u8[65536]{0}', space=vmem, size = 0x10000, scoped, tag = 'input window, operand 1, single buffered']
    #allocation6 [shape = 's32[1]{0}', space=sflag, size = 0x4, scoped, tag = 'scoped memory for tpu_custom_call.1']
    #allocation7 [shape = 'u8[1024]{0}', space=vmem, size = 0x400, scoped, tag = 'input window, operand 2, single buffered']
    #allocation8 [shape = 'u8[65536]{0}', space=vmem, size = 0x10000, scoped, tag = 'input window, operand 3, single buffered']
    #allocation9 [shape = 's32[1]{0}', space=sflag, size = 0x4, scoped, tag = 'scoped memory for tpu_custom_call.1']
    #allocation10 [shape = 'u8[8192]{0}', space=vmem, size = 0x2000, scoped, tag = 'output window, operand 0, single buffered']
    %10 = vsyncpa [#allocation3], 0
    %11 = vsyncpa [#allocation6], 0
    %12 = vsyncpa [#allocation9], 0
    %13 = vsyncpa [#allocation4], 0
    // Predicated region
    $region2: #{tpu_custom_call.1} parent=1 // pred_check
      _
    $region3: #{tpu_custom_call.1} parent=1 // pred_check_branch
      %15 = sbr.rel (0) target = $region5
    $region4: #{tpu_custom_call.1} parent=1 // pred_region
      %17 = vsyncadd [#allocation3], 0
      %s18 = sshll.u32 %s0, 4
      %s19 = int_to_ptr.hbm [resolvable:$true] %s18
      %s20 = sshll.u32 [#allocation2], 4
      %s21 = int_to_ptr.vmem [resolvable:$true] %s20
      %26 = dma.hbm_to_vmem [thread:$0]  %s19, 128, %s21, [#allocation3], 64, 64, 4
    $region5: #{tpu_custom_call.1} parent=1 // pred_fallthru
      _
    // Predicated region
    $region6: #{tpu_custom_call.1} parent=1 // pred_check
      _
    $region7: #{tpu_custom_call.1} parent=1 // pred_check_branch
      %28 = sbr.rel (0) target = $region9
    $region8: #{tpu_custom_call.1} parent=1 // pred_region
      %30 = vsyncadd [#allocation6], 0
      %s31 = sshll.u32 %s1, 4
      %s32 = int_to_ptr.hbm [resolvable:$true] %s31
      %s33 = sshll.u32 [#allocation5], 4
      %s34 = int_to_ptr.vmem [resolvable:$true] %s33
      %39 = dma.hbm_to_vmem [thread:$0]  %s32, 2048, %s34, [#allocation6], 128, 128, 8
    $region9: #{tpu_custom_call.1} parent=1 // pred_fallthru
      _
    // Predicated region
    $region10: #{tpu_custom_call.1} parent=1 // pred_check
      _
    $region11: #{tpu_custom_call.1} parent=1 // pred_check_branch
      %41 = sbr.rel (0) target = $region13
    $region12: #{tpu_custom_call.1} parent=1 // pred_region
      %43 = vsyncadd [#allocation6], 0
      %s45 = sshll.u32 %s2, 4
      %s46 = int_to_ptr.hbm [resolvable:$true] %s45
      %s47 = sshll.u32 [#allocation7], 4
      %s48 = int_to_ptr.vmem [resolvable:$true] %s47
      %50 = dma.hbm_to_vmem [thread:$0]  %s46, 32, %s48, [#allocation6]
    $region13: #{tpu_custom_call.1} parent=1 // pred_fallthru
      _
    // Predicated region
    $region14: #{tpu_custom_call.1} parent=1 // pred_check
      _
    $region15: #{tpu_custom_call.1} parent=1 // pred_check_branch
      %52 = sbr.rel (0) target = $region17
    $region16: #{tpu_custom_call.1} parent=1 // pred_region
      %54 = vsyncadd [#allocation9], 0
      %s55 = sshll.u32 %s3, 4
      %s56 = int_to_ptr.hbm [resolvable:$true] %s55
      %s57 = sshll.u32 [#allocation8], 4
      %s58 = int_to_ptr.vmem [resolvable:$true] %s57
      %63 = dma.hbm_to_vmem [thread:$0]  %s56, 2048, %s58, [#allocation9], 64, 64, 4
    $region17: #{tpu_custom_call.1} parent=1 // pred_fallthru
      _
    // Predicated region
    $region18: #{tpu_custom_call.1} parent=1 // pred_check
      _
    $region19: #{tpu_custom_call.1} parent=1 // pred_check_branch
      %65 = sbr.rel (0) target = $region21
    $region20: #{tpu_custom_call.1} parent=1 // pred_region
      _
    $region21: #{tpu_custom_call.1} parent=1 // pred_fallthru
      _
    // Predicated region
    $region22: #{tpu_custom_call.1} parent=1 // pred_check
      _
    $region23: #{tpu_custom_call.1} parent=1 // pred_check_branch
      %67 = sbr.rel (0) target = $region25
    $region24: #{tpu_custom_call.1} parent=1 // pred_region
      %69 = dma.done [#allocation3], 128
    $region25: #{tpu_custom_call.1} parent=1 // pred_fallthru
      _
    // Predicated region
    $region26: #{tpu_custom_call.1} parent=1 // pred_check
      _
    $region27: #{tpu_custom_call.1} parent=1 // pred_check_branch
      %71 = sbr.rel (0) target = $region29
    $region28: #{tpu_custom_call.1} parent=1 // pred_region
      %73 = dma.done [#allocation6], 2048
    $region29: #{tpu_custom_call.1} parent=1 // pred_fallthru
      _
    // Predicated region
    $region30: #{tpu_custom_call.1} parent=1 // pred_check
      _
    $region31: #{tpu_custom_call.1} parent=1 // pred_check_branch
      %75 = sbr.rel (0) target = $region33
    $region32: #{tpu_custom_call.1} parent=1 // pred_region
      %77 = dma.done [#allocation6], 32
    $region33: #{tpu_custom_call.1} parent=1 // pred_fallthru
      _
    // Predicated region
    $region34: #{tpu_custom_call.1} parent=1 // pred_check
      _
    $region35: #{tpu_custom_call.1} parent=1 // pred_check_branch
      %79 = sbr.rel (0) target = $region37
    $region36: #{tpu_custom_call.1} parent=1 // pred_region
      %81 = dma.done [#allocation9], 2048
    $region37: #{tpu_custom_call.1} parent=1 // pred_fallthru
      _
    %v82 = vld [vmem:[#allocation2] sm:$0xf]
    %v83 = vld [vmem:[#allocation2 + $0x4] sm:$0xf]
    %v84 = vld [vmem:[#allocation5] sm:$0xff]
    %v85 = vld [vmem:[#allocation5 + $0x8] sm:$0xff]
    %v86 = vld [vmem:[#allocation5 + $0x10] sm:$0xff]
    %v87 = vld [vmem:[#allocation5 + $0x18] sm:$0xff]
    %v88 = vld [vmem:[#allocation5 + $0x20] sm:$0xff]
    %v89 = vld [vmem:[#allocation5 + $0x28] sm:$0xff]
    %v90 = vld [vmem:[#allocation5 + $0x30] sm:$0xff]
    %v91 = vld [vmem:[#allocation5 + $0x38] sm:$0xff]
    %v92 = vld [vmem:[#allocation5 + $0x40] sm:$0xff]
    %v93 = vld [vmem:[#allocation5 + $0x48] sm:$0xff]
    %v94 = vld [vmem:[#allocation5 + $0x50] sm:$0xff]
    %v95 = vld [vmem:[#allocation5 + $0x58] sm:$0xff]
    %v96 = vld [vmem:[#allocation5 + $0x60] sm:$0xff]
    %v97 = vld [vmem:[#allocation5 + $0x68] sm:$0xff]
    %v98 = vld [vmem:[#allocation5 + $0x70] sm:$0xff]
    %v99 = vld [vmem:[#allocation5 + $0x78] sm:$0xff]
    %v100 = vld [vmem:[#allocation7] sm:$0x3]
    %v102 = vperm.slane %v100, 0
    %v103 = vperm.slane %v100, 1
    %v108 = vunpack.c.l.b16 %v82
    %v109 = vunpack.c.l.b16 %v83
    %v110 = vpack.c.b16 %v109, %v108
    %v128 = vunpack.c.l.b16 %v84
    %v129 = vunpack.c.h.b16 %v84
    %v130 = vunpack.c.l.b16 %v85
    %v131 = vunpack.c.h.b16 %v85
    %v132 = vunpack.c.l.b16 %v86
    %v133 = vunpack.c.h.b16 %v86
    %v134 = vunpack.c.l.b16 %v87
    %v135 = vunpack.c.h.b16 %v87
    %v136 = vunpack.c.l.b16 %v88
    %v137 = vunpack.c.h.b16 %v88
    %v138 = vunpack.c.l.b16 %v89
    %v139 = vunpack.c.h.b16 %v89
    %v140 = vunpack.c.l.b16 %v90
    %v141 = vunpack.c.h.b16 %v90
    %v142 = vunpack.c.l.b16 %v91
    %v143 = vunpack.c.h.b16 %v91
    %v144 = vunpack.c.l.b16 %v92
    %v145 = vunpack.c.h.b16 %v92
    %v146 = vunpack.c.l.b16 %v93
    %v147 = vunpack.c.h.b16 %v93
    %v148 = vunpack.c.l.b16 %v94
    %v149 = vunpack.c.h.b16 %v94
    %v150 = vunpack.c.l.b16 %v95
    %v151 = vunpack.c.h.b16 %v95
    %v152 = vunpack.c.l.b16 %v96
    %v153 = vunpack.c.h.b16 %v96
    %v154 = vunpack.c.l.b16 %v97
    %v155 = vunpack.c.h.b16 %v97
    %v156 = vunpack.c.l.b16 %v98
    %v157 = vunpack.c.h.b16 %v98
    %v158 = vunpack.c.l.b16 %v99
    %v159 = vunpack.c.h.b16 %v99
    %v160 = vpack.c.b16 %v130, %v128
    %v161 = vpack.c.b16 %v131, %v129
    %v162 = vpack.c.b16 %v134, %v132
    %v163 = vpack.c.b16 %v135, %v133
    %v164 = vpack.c.b16 %v138, %v136
    %v165 = vpack.c.b16 %v139, %v137
    %v166 = vpack.c.b16 %v142, %v140
    %v167 = vpack.c.b16 %v143, %v141
    %v168 = vpack.c.b16 %v146, %v144
    %v169 = vpack.c.b16 %v147, %v145
    %v170 = vpack.c.b16 %v150, %v148
    %v171 = vpack.c.b16 %v151, %v149
    %v172 = vpack.c.b16 %v154, %v152
    %v173 = vpack.c.b16 %v155, %v153
    %v174 = vpack.c.b16 %v158, %v156
    %v175 = vpack.c.b16 %v159, %v157
    %192 = vmatpush.bf16.msra.mxu0 %v174
    %193 = vmatpush.bf16.msra.mxu0 %v172
    %194 = vmatpush.bf16.msra.mxu0 %v170
    %195 = vmatpush.bf16.msra.mxu0 %v168
    %196 = vmatpush.bf16.msra.mxu0 %v166
    %197 = vmatpush.bf16.msra.mxu0 %v164
    %198 = vmatpush.bf16.msra.mxu0 %v162
    %199 = vmatpush.bf16.msra.mxu0 %v160
    %200 = vmatmul.bf16.gmra.mxu0 %v110
    %v201 = vpop.f32.mrf.mxu0
    %v202 = vadd.f32 %v102, %v201
    %v203 = vpop.f32.mrf.mxu0
    %v204 = vadd.f32 %v102, %v203
    %205 = vdwg.mxu0
    %206 = vmatpush.bf16.msra.mxu0 %v175
    %207 = vmatpush.bf16.msra.mxu0 %v173
    %208 = vmatpush.bf16.msra.mxu0 %v171
    %209 = vmatpush.bf16.msra.mxu0 %v169
    %210 = vmatpush.bf16.msra.mxu0 %v167
    %211 = vmatpush.bf16.msra.mxu0 %v165
    %212 = vmatpush.bf16.msra.mxu0 %v163
    %213 = vmatpush.bf16.msra.mxu0 %v161
    %214 = vmatmul.bf16.gmra.mxu0 %v110
    %v215 = vpop.f32.mrf.mxu0
    %v216 = vadd.f32 %v103, %v215
    %v217 = vpop.f32.mrf.mxu0
    %v218 = vadd.f32 %v103, %v217
    %219 = vdwg.mxu0
    %v220 = vmax.f32 %v202, 0.0
    %v221 = vmax.f32 %v216, 0.0
    %v222 = vmax.f32 %v204, 0.0
    %v223 = vmax.f32 %v218, 0.0
    %v224 = vpack.c.bf16 %v222, %v220
    %v225 = vpack.c.bf16 %v223, %v221
    %v226 = vld [vmem:[#allocation8] sm:$0xf]
    %v227 = vld [vmem:[#allocation8 + $0x4] sm:$0xf]
    %v228 = vld [vmem:[#allocation8 + $0x8] sm:$0xf]
    %v229 = vld [vmem:[#allocation8 + $0xc] sm:$0xf]
    %v230 = vld [vmem:[#allocation8 + $0x10] sm:$0xf]
    %v231 = vld [vmem:[#allocation8 + $0x14] sm:$0xf]
    %v232 = vld [vmem:[#allocation8 + $0x18] sm:$0xf]
    %v233 = vld [vmem:[#allocation8 + $0x1c] sm:$0xf]
    %v234 = vld [vmem:[#allocation8 + $0x20] sm:$0xf]
    %v235 = vld [vmem:[#allocation8 + $0x24] sm:$0xf]
    %v236 = vld [vmem:[#allocation8 + $0x28] sm:$0xf]
    %v237 = vld [vmem:[#allocation8 + $0x2c] sm:$0xf]
    %v238 = vld [vmem:[#allocation8 + $0x30] sm:$0xf]
    %v239 = vld [vmem:[#allocation8 + $0x34] sm:$0xf]
    %v240 = vld [vmem:[#allocation8 + $0x38] sm:$0xf]
    %v241 = vld [vmem:[#allocation8 + $0x3c] sm:$0xf]
    %v242 = vld [vmem:[#allocation8 + $0x40] sm:$0xf]
    %v243 = vld [vmem:[#allocation8 + $0x44] sm:$0xf]
    %v244 = vld [vmem:[#allocation8 + $0x48] sm:$0xf]
    %v245 = vld [vmem:[#allocation8 + $0x4c] sm:$0xf]
    %v246 = vld [vmem:[#allocation8 + $0x50] sm:$0xf]
    %v247 = vld [vmem:[#allocation8 + $0x54] sm:$0xf]
    %v248 = vld [vmem:[#allocation8 + $0x58] sm:$0xf]
    %v249 = vld [vmem:[#allocation8 + $0x5c] sm:$0xf]
    %v250 = vld [vmem:[#allocation8 + $0x60] sm:$0xf]
    %v251 = vld [vmem:[#allocation8 + $0x64] sm:$0xf]
    %v252 = vld [vmem:[#allocation8 + $0x68] sm:$0xf]
    %v253 = vld [vmem:[#allocation8 + $0x6c] sm:$0xf]
    %v254 = vld [vmem:[#allocation8 + $0x70] sm:$0xf]
    %v255 = vld [vmem:[#allocation8 + $0x74] sm:$0xf]
    %v256 = vld [vmem:[#allocation8 + $0x78] sm:$0xf]
    %v257 = vld [vmem:[#allocation8 + $0x7c] sm:$0xf]
    %v258 = vld [vmem:[%s4] sm:$0x1]
    %v260 = vperm.slane %v258, 0
    %v294 = vunpack.c.l.b16 %v226
    %v295 = vunpack.c.l.b16 %v227
    %v296 = vunpack.c.l.b16 %v228
    %v297 = vunpack.c.l.b16 %v229
    %v298 = vunpack.c.l.b16 %v230
    %v299 = vunpack.c.l.b16 %v231
    %v300 = vunpack.c.l.b16 %v232
    %v301 = vunpack.c.l.b16 %v233
    %v302 = vunpack.c.l.b16 %v234
    %v303 = vunpack.c.l.b16 %v235
    %v304 = vunpack.c.l.b16 %v236
    %v305 = vunpack.c.l.b16 %v237
    %v306 = vunpack.c.l.b16 %v238
    %v307 = vunpack.c.l.b16 %v239
    %v308 = vunpack.c.l.b16 %v240
    %v309 = vunpack.c.l.b16 %v241
    %v310 = vunpack.c.l.b16 %v242
    %v311 = vunpack.c.l.b16 %v243
    %v312 = vunpack.c.l.b16 %v244
    %v313 = vunpack.c.l.b16 %v245
    %v314 = vunpack.c.l.b16 %v246
    %v315 = vunpack.c.l.b16 %v247
    %v316 = vunpack.c.l.b16 %v248
    %v317 = vunpack.c.l.b16 %v249
    %v318 = vunpack.c.l.b16 %v250
    %v319 = vunpack.c.l.b16 %v251
    %v320 = vunpack.c.l.b16 %v252
    %v321 = vunpack.c.l.b16 %v253
    %v322 = vunpack.c.l.b16 %v254
    %v323 = vunpack.c.l.b16 %v255
    %v324 = vunpack.c.l.b16 %v256
    %v325 = vunpack.c.l.b16 %v257
    %v326 = vpack.c.b16 %v295, %v294
    %v327 = vpack.c.b16 %v297, %v296
    %v328 = vpack.c.b16 %v299, %v298
    %v329 = vpack.c.b16 %v301, %v300
    %v330 = vpack.c.b16 %v303, %v302
    %v331 = vpack.c.b16 %v305, %v304
    %v332 = vpack.c.b16 %v307, %v306
    %v333 = vpack.c.b16 %v309, %v308
    %v334 = vpack.c.b16 %v311, %v310
    %v335 = vpack.c.b16 %v313, %v312
    %v336 = vpack.c.b16 %v315, %v314
    %v337 = vpack.c.b16 %v317, %v316
    %v338 = vpack.c.b16 %v319, %v318
    %v339 = vpack.c.b16 %v321, %v320
    %v340 = vpack.c.b16 %v323, %v322
    %v341 = vpack.c.b16 %v325, %v324
    %358 = vmatpush.bf16.msra.mxu0 %v333
    %359 = vmatpush.bf16.msra.mxu0 %v332
    %360 = vmatpush.bf16.msra.mxu0 %v331
    %361 = vmatpush.bf16.msra.mxu0 %v330
    %362 = vmatpush.bf16.msra.mxu0 %v329
    %363 = vmatpush.bf16.msra.mxu0 %v328
    %364 = vmatpush.bf16.msra.mxu0 %v327
    %365 = vmatpush.bf16.msra.mxu0 %v326
    %366 = vmatmul.bf16.gmra.mxu0 %v224
    %v367 = vpop.f32.mrf.mxu0
    %v368 = vadd.f32 %v260, %v367
    %v369 = vpop.f32.mrf.mxu0
    %v370 = vadd.f32 %v260, %v369
    %371 = vdwg.mxu0
    %372 = vmatpush.bf16.msra.mxu0 %v341
    %373 = vmatpush.bf16.msra.mxu0 %v340
    %374 = vmatpush.bf16.msra.mxu0 %v339
    %375 = vmatpush.bf16.msra.mxu0 %v338
    %376 = vmatpush.bf16.msra.mxu0 %v337
    %377 = vmatpush.bf16.msra.mxu0 %v336
    %378 = vmatpush.bf16.msra.mxu0 %v335
    %379 = vmatpush.bf16.msra.mxu0 %v334
    %380 = vmatmul.bf16.gmra.mxu0 %v225
    %v381 = vpop.f32.mrf.mxu0
    %v382 = vadd.f32 %v368, %v381
    %v383 = vpop.f32.mrf.mxu0
    %v384 = vadd.f32 %v370, %v383
    %385 = vdwg.mxu0
    %386 = vst [vmem:[#allocation10] sm:$0xff] %v382
    %387 = vst [vmem:[#allocation10 + $0x8] sm:$0xff] %v384
    // Predicated region
    $region38: #{tpu_custom_call.1} parent=1 // pred_check
      _
    $region39: #{tpu_custom_call.1} parent=1 // pred_check_branch
      %389 = sbr.rel (0) target = $region41
    $region40: #{tpu_custom_call.1} parent=1 // pred_region
      %391 = vsyncadd [#allocation4], 0
      %s392 = sshll.u32 [#allocation10], 4
      %s393 = int_to_ptr.vmem [resolvable:$true] %s392
      %s394 = sshll.u32 %s5, 4
      %s395 = int_to_ptr.hbm [resolvable:$true] %s394
      %400 = dma.vmem_to_hbm [thread:$0]  %s393, 256, %s395, [#allocation4], 128, 128, 8
    $region41: #{tpu_custom_call.1} parent=1 // pred_fallthru
      _
    // Predicated region
    $region42: #{tpu_custom_call.1} parent=1 // pred_check
      _
    $region43: #{tpu_custom_call.1} parent=1 // pred_check_branch
      %402 = sbr.rel (0) target = $region45
    $region44: #{tpu_custom_call.1} parent=1 // pred_region
      %404 = dma.done [#allocation4], 256
    $region45: #{tpu_custom_call.1} parent=1 // pred_fallthru
      _
    %405 = vsyncpa [#allocation3], 1
    %406 = vsyncpa [#allocation6], 1
    %407 = vsyncpa [#allocation9], 1
    %408 = vsyncpa [#allocation4], 1

</llo_original>
